<compile_context>
chip_gen: v6e
topology: v6e:2x2x1
jax: 0.10.0
libtpu: 0.0.40
codegen_flags: <defaults>
</compile_context>

<pallas_src>
import functools

import jax
import jax.numpy as jnp
from jax.experimental import pallas as pl
from jax.experimental.pallas import tpu as pltpu


def _round_up(x: int, m: int) -> int:
    return ((x + m - 1) // m) * m


def _cdiv(a: int, b: int) -> int:
    return (a + b - 1) // b


def _detect_vmem_capacity() -> int:
    try:
        return int(pltpu.get_tpu_info().vmem_capacity_bytes)
    except Exception:
        return 64 * 1024 * 1024  # conservative (v7x-class) fallback


# --------------------------------------------------------------------------
# Kernels
# --------------------------------------------------------------------------
def ffn_kernel_resident(x_ref, w1_ref, b1_ref, w2_ref, b2_ref, o_ref):
    # Full d_ff resident in VMEM: single fused pass, no scratch accumulator.
    #   x_ref: (tm, Dp)   w1_ref: (Dp, Fp)   b1_ref: (1, Fp)
    #   w2_ref: (Fp, Dp)  b2_ref: (1, Dp)    o_ref: (tm, Dp)
    h = jnp.dot(x_ref[...], w1_ref[...], preferred_element_type=jnp.float32)
    h = jnp.maximum(h + b1_ref[...].astype(jnp.float32), 0.0)       # ReLU(xW1+b1)
    y = jnp.dot(h.astype(w2_ref.dtype), w2_ref[...],
                preferred_element_type=jnp.float32)
    o_ref[...] = (y + b2_ref[...].astype(jnp.float32)).astype(o_ref.dtype)


def ffn_kernel_panelled(x_ref, w1_ref, b1_ref, w2_ref, b2_ref, o_ref, acc_ref):
    # d_ff streamed in panels; acc_ref is a (tm, Dp) f32 VMEM accumulator.
    k = pl.program_id(1)

    @pl.when(k == 0)
    def _init():
        acc_ref[...] = jnp.zeros_like(acc_ref)

    h = jnp.dot(x_ref[...], w1_ref[...], preferred_element_type=jnp.float32)
    h = jnp.maximum(h + b1_ref[...].astype(jnp.float32), 0.0)
    acc_ref[...] += jnp.dot(h.astype(w2_ref.dtype), w2_ref[...],
                            preferred_element_type=jnp.float32)

    @pl.when(k == pl.num_programs(1) - 1)
    def _finalize():
        o_ref[...] = (acc_ref[...] + b2_ref[...].astype(jnp.float32)).astype(o_ref.dtype)


# --------------------------------------------------------------------------
# Jitted implementation (all tiling decisions are static arguments)
# --------------------------------------------------------------------------
@functools.partial(jax.jit, static_argnames=(
    "tm", "tff", "m_p", "d_model_p", "d_ff_p", "compute_dtype", "vmem_limit_bytes"))
def _ffn_impl(x, w1, b1, w2, b2, *, tm, tff, m_p, d_model_p, d_ff_p,
              compute_dtype, vmem_limit_bytes):
    batch, seq, d_model = x.shape
    d_ff = w1.shape[1]
    M = batch * seq
    out_dtype = x.dtype
    cdt = jnp.dtype(compute_dtype)

    def pad2(a, r, c):
        if a.shape == (r, c):
            return a
        return jnp.pad(a, ((0, r - a.shape[0]), (0, c - a.shape[1])))

    # Zero padding is mathematically exact; cast operands to the MXU compute dtype.
    xp = pad2(x.reshape(M, d_model), m_p, d_model_p).astype(cdt)
    w1p = pad2(w1, d_model_p, d_ff_p).astype(cdt)
    w2p = pad2(w2, d_ff_p, d_model_p).astype(cdt)
    b1p = pad2(b1.reshape(1, -1), 1, d_ff_p).astype(jnp.float32)
    b2p = pad2(b2.reshape(1, -1), 1, d_model_p).astype(jnp.float32)

    n_row = m_p // tm
    single = (tff == d_ff_p)

    csz = cdt.itemsize
    weight_bytes = w1p.size * csz + w2p.size * csz
    weight_passes = 1 if single else n_row
    cost = pl.CostEstimate(
        flops=4 * m_p * d_model_p * d_ff_p,              # two matmuls
        transcendentals=0,
        bytes_accessed=(xp.size * csz
                        + weight_passes * weight_bytes
                        + (b1p.size + b2p.size) * 4
                        + m_p * d_model_p * jnp.dtype(out_dtype).itemsize),
    )

    if single:
        # Weights are grid-resident: constant block indices -> DMA'd exactly once.
        grid_spec = pltpu.PrefetchScalarGridSpec(
            num_scalar_prefetch=0,
            grid=(n_row,),
            in_specs=[
                pl.BlockSpec((tm, d_model_p), lambda i: (i, 0)),        # x rows
                pl.BlockSpec((d_model_p, d_ff_p), lambda i: (0, 0)),    # W1 (resident)
                pl.BlockSpec((1, d_ff_p), lambda i: (0, 0)),            # b1
                pl.BlockSpec((d_ff_p, d_model_p), lambda i: (0, 0)),    # W2 (resident)
                pl.BlockSpec((1, d_model_p), lambda i: (0, 0)),         # b2
            ],
            out_specs=pl.BlockSpec((tm, d_model_p), lambda i: (i, 0)),
        )
        kernel = ffn_kernel_resident
        dims = ("parallel",)
    else:
        grid_spec = pltpu.PrefetchScalarGridSpec(
            num_scalar_prefetch=0,
            grid=(n_row, d_ff_p // tff),
            in_specs=[
                pl.BlockSpec((tm, d_model_p), lambda i, k: (i, 0)),     # x rows
                pl.BlockSpec((d_model_p, tff), lambda i, k: (0, k)),    # W1 panel
                pl.BlockSpec((1, tff), lambda i, k: (0, k)),            # b1 panel
                pl.BlockSpec((tff, d_model_p), lambda i, k: (k, 0)),    # W2 panel
                pl.BlockSpec((1, d_model_p), lambda i, k: (0, 0)),      # b2
            ],
            out_specs=pl.BlockSpec((tm, d_model_p), lambda i, k: (i, 0)),
            scratch_shapes=[pltpu.VMEM((tm, d_model_p), jnp.float32)],
        )
        kernel = ffn_kernel_panelled
        dims = ("parallel", "arbitrary")

    out2 = pl.pallas_call(
        kernel,
        out_shape=jax.ShapeDtypeStruct((m_p, d_model_p), out_dtype),
        grid_spec=grid_spec,
        compiler_params=pltpu.CompilerParams(
            dimension_semantics=dims,
            vmem_limit_bytes=vmem_limit_bytes,
        ),
        cost_estimate=cost,
    )(xp, w1p, b1p, w2p, b2p)

    return out2[:M, :d_model].reshape(batch, seq, d_model)


# --------------------------------------------------------------------------
# Public wrapper: derives static tiling config from shapes / dtypes / device.
# --------------------------------------------------------------------------
def position_wise_ffn(x, w1, b1, w2, b2, *, tm=None, tff=None,
                      compute_dtype=None, vmem_limit_bytes=None):
    """y = relu(x @ w1 + b1) @ w2 + b2, applied along the last axis of x.

    x:  (batch, seq, d_model)
    w1: (d_model, d_ff)   b1: (d_ff,)
    w2: (d_ff, d_model)   b2: (d_model,)
    """
    batch, seq, d_model = x.shape
    d_ff = w1.shape[1]
    assert w1.shape == (d_model, d_ff)
    assert b1.shape == (d_ff,)
    assert w2.shape == (d_ff, d_model)
    assert b2.shape == (d_model,)
    M = batch * seq

    # ---- VMEM budget (device-aware) ----
    if vmem_limit_bytes is None:
        cap = _detect_vmem_capacity()
        vmem_limit_bytes = min((cap * 3) // 4, 100 * 1024 * 1024)

    # ---- compute dtype: bf16 MXU feed for non-tiny layers, f32 otherwise ----
    if compute_dtype is None:
        big = (d_model * d_ff >= 128 * 128) or x.dtype == jnp.bfloat16
        compute_dtype = jnp.bfloat16 if big else x.dtype
    compute_dtype = jnp.dtype(compute_dtype)
    sub = {2: 16, 1: 32}.get(compute_dtype.itemsize, 8)   # native sublane packing

    # ---- lane-dense feature padding ----
    d_model_p = _round_up(max(d_model, 128), 128)
    d_ff_p = _round_up(max(d_ff, 128), 128)

    # ---- balanced, sublane-aligned row tiles; >=2 tiles for large M (megacore) ----
    if tm is None:
        tm = 512 if vmem_limit_bytes >= 80 * 1024 * 1024 else 256
    n_row = max(1, _cdiv(M, tm))
    if n_row == 1 and M >= 512:
        n_row = 2
    tm_eff = _round_up(_cdiv(M, n_row), sub)
    m_p = _round_up(M, tm_eff)

    # ---- d_ff panel size: make weights grid-resident when they fit VMEM ----
    out_isz = jnp.dtype(x.dtype).itemsize
    csz = compute_dtype.itemsize

    def vmem_estimate(tff_e, single):
        x_b = 2 * tm_eff * d_model_p * csz          # double-buffered x tile
        o_b = 2 * tm_eff * d_model_p * out_isz      # double-buffered out tile
        w_b = 2 * (d_model_p * tff_e + tff_e * d_model_p) * csz
        bias_b = 2 * (tff_e + d_model_p) * 4
        h_b = tm_eff * tff_e * 4                    # f32 intermediate h
        acc_b = 0 if single else tm_eff * d_model_p * 4
        return x_b + o_b + w_b + bias_b + h_b + acc_b

    budget = int(vmem_limit_bytes * 0.8)            # headroom for Mosaic scratch

    if tff is None:
        if vmem_estimate(d_ff_p, True) <= budget:
            tff_eff = d_ff_p                         # resident path
        else:
            tff_eff = 1024
            while tff_eff > 128 and vmem_estimate(tff_eff, False) > budget:
                tff_eff //= 2
            tff_eff = max(tff_eff, 128)
    else:
        tff_eff = min(tff, d_ff_p)

    if tff_eff < d_ff_p:
        d_ff_p = _round_up(d_ff_p, tff_eff)          # exact panelling
    else:
        tff_eff = d_ff_p

    return _ffn_impl(x, w1, b1, w2, b2,
                     tm=tm_eff, tff=tff_eff, m_p=m_p,
                     d_model_p=d_model_p, d_ff_p=d_ff_p,
                     compute_dtype=compute_dtype,
                     vmem_limit_bytes=int(vmem_limit_bytes))


def init_params(key, d_model, d_ff, dtype=jnp.float32):
    """nn.Linear-style init (uniform +/- 1/sqrt(fan_in)); weights stored (in, out)."""
    k1, k2, k3, k4 = jax.random.split(key, 4)
    lim1 = 1.0 / (d_model ** 0.5)
    lim2 = 1.0 / (d_ff ** 0.5)
    w1 = jax.random.uniform(k1, (d_model, d_ff), dtype, -lim1, lim1)
    b1 = jax.random.uniform(k2, (d_ff,), dtype, -lim1, lim1)
    w2 = jax.random.uniform(k3, (d_ff, d_model), dtype, -lim2, lim2)
    b2 = jax.random.uniform(k4, (d_model,), dtype, -lim2, lim2)
    return w1, b1, w2, b2


def _ref_ffn(x, w1, b1, w2, b2):
    return jnp.maximum(x @ w1 + b1, 0.0) @ w2 + b2


if __name__ == "__main__":
    key = jax.random.PRNGKey(0)

    # 1) Small f32 demo (resident path, f32 compute, tight tolerance).
    batch, seq, d_model, d_ff = 2, 8, 32, 64
    kx, kp = jax.random.split(key)
    x = jax.random.normal(kx, (batch, seq, d_model), jnp.float32)
    w1, b1, w2, b2 = init_params(kp, d_model, d_ff)

    out = jax.block_until_ready(position_wise_ffn(x, w1, b1, w2, b2))
    ref = _ref_ffn(x, w1, b1, w2, b2)
    assert out.shape == (batch, seq, d_model)
    assert jnp.allclose(out, ref, atol=2e-5, rtol=2e-5)

    # 2) Tail handling: row count not a multiple of the tile (M = 21).
    x_odd = jax.random.normal(jax.random.PRNGKey(1), (3, 7, d_model), jnp.float32)
    out_odd = jax.block_until_ready(position_wise_ffn(x_odd, w1, b1, w2, b2))
    ref_odd = _ref_ffn(x_odd, w1, b1, w2, b2)
    assert jnp.allclose(out_odd, ref_odd, atol=2e-5, rtol=2e-5)

    # 3) Panelled accumulator path (force small d_ff panels), f32 compute.
    d_model3, d_ff3 = 128, 384
    kx3, kp3 = jax.random.split(jax.random.PRNGKey(2))
    x3 = jax.random.normal(kx3, (2, 16, d_model3), jnp.float32)
    p3 = init_params(kp3, d_model3, d_ff3)
    out3 = jax.block_until_ready(
        position_wise_ffn(x3, *p3, tff=128, compute_dtype=jnp.float32))
    ref3 = _ref_ffn(x3, *p3)
    assert jnp.allclose(out3, ref3, atol=2e-4, rtol=2e-4)

    # 4) bf16 MXU-feed path (resident), looser tolerance vs f32 reference.
    out4 = jax.block_until_ready(
        position_wise_ffn(x3, *p3, compute_dtype=jnp.bfloat16))
    assert jnp.allclose(out4, ref3, atol=3e-2, rtol=3e-2)

    print("KERNEL_OK")
</pallas_src>

<mosaic_0001>
module attributes {stable_mosaic.version = 11 : i64} {
  func.func @ffn_kernel_resident(%arg0: i32, %arg1: memref<16x128xf32, #tpu.memory_space<vmem>>, %arg2: memref<128x128xf32, #tpu.memory_space<vmem>>, %arg3: memref<1x128xf32, #tpu.memory_space<vmem>>, %arg4: memref<128x128xf32, #tpu.memory_space<vmem>>, %arg5: memref<1x128xf32, #tpu.memory_space<vmem>>, %arg6: memref<16x128xf32, #tpu.memory_space<vmem>>) attributes {dimension_semantics = [#tpu.dimension_semantics<parallel>], iteration_bounds = array<i64: 1>, scalar_prefetch = 0 : i64, scratch_operands = 0 : i64, tpu.core_type = #tpu.core_type<tc>, window_params = [{transform_indices = @transform_0, window_bounds = array<i64: 16, 128>}, {pipeline_mode = #tpu.pipeline_mode<synchronous>, transform_indices = @transform_1, window_bounds = array<i64: 128, 128>}, {pipeline_mode = #tpu.pipeline_mode<synchronous>, transform_indices = @transform_2, window_bounds = array<i64: 1, 128>}, {pipeline_mode = #tpu.pipeline_mode<synchronous>, transform_indices = @transform_3, window_bounds = array<i64: 128, 128>}, {pipeline_mode = #tpu.pipeline_mode<synchronous>, transform_indices = @transform_4, window_bounds = array<i64: 1, 128>}, {transform_indices = @transform_5, window_bounds = array<i64: 16, 128>}]} {
    %c0 = arith.constant 0 : index
    %c0_0 = arith.constant 0 : index
    %0 = vector.load %arg1[%c0, %c0_0] : memref<16x128xf32, #tpu.memory_space<vmem>>, vector<16x128xf32>
    %c0_1 = arith.constant 0 : index
    %c0_2 = arith.constant 0 : index
    %1 = vector.load %arg2[%c0_1, %c0_2] : memref<128x128xf32, #tpu.memory_space<vmem>>, vector<128x128xf32>
    %cst = arith.constant dense<0.000000e+00> : vector<16x128xf32>
    %2 = tpu.matmul %0, %1, %cst {dimension_numbers = #tpu.dot_dimension_numbers<[1], [0], [0], [1], [0, 0, 1, 1], [], []>} : vector<16x128xf32>, vector<128x128xf32>, vector<16x128xf32> -> vector<16x128xf32>
    %c0_3 = arith.constant 0 : index
    %c0_4 = arith.constant 0 : index
    %3 = vector.load %arg3[%c0_3, %c0_4] : memref<1x128xf32, #tpu.memory_space<vmem>>, vector<1x128xf32>
    %4 = vector.broadcast %3 : vector<1x128xf32> to vector<16x128xf32>
    %5 = arith.addf %2, %4 : vector<16x128xf32>
    %cst_5 = arith.constant 0.000000e+00 : f32
    %6 = vector.broadcast %cst_5 : f32 to vector<16x128xf32>
    %7 = arith.maximumf %5, %6 : vector<16x128xf32>
    %c0_6 = arith.constant 0 : index
    %c0_7 = arith.constant 0 : index
    %8 = vector.load %arg4[%c0_6, %c0_7] : memref<128x128xf32, #tpu.memory_space<vmem>>, vector<128x128xf32>
    %cst_8 = arith.constant dense<0.000000e+00> : vector<16x128xf32>
    %9 = tpu.matmul %7, %8, %cst_8 {dimension_numbers = #tpu.dot_dimension_numbers<[1], [0], [0], [1], [0, 0, 1, 1], [], []>} : vector<16x128xf32>, vector<128x128xf32>, vector<16x128xf32> -> vector<16x128xf32>
    %c0_9 = arith.constant 0 : index
    %c0_10 = arith.constant 0 : index
    %10 = vector.load %arg5[%c0_9, %c0_10] : memref<1x128xf32, #tpu.memory_space<vmem>>, vector<1x128xf32>
    %11 = vector.broadcast %10 : vector<1x128xf32> to vector<16x128xf32>
    %12 = arith.addf %9, %11 : vector<16x128xf32>
    %c0_11 = arith.constant 0 : index
    %c0_12 = arith.constant 0 : index
    %13 = vector.load %arg6[%c0_11, %c0_12] : memref<16x128xf32, #tpu.memory_space<vmem>>, vector<16x128xf32>
    tpu.vector_store %arg6[%c0_11, %c0_12], %12 {strides = array<i32>} : memref<16x128xf32, #tpu.memory_space<vmem>>, vector<16x128xf32>,
    return
  }
  func.func @transform_0(%arg0: i32) -> (i32, i32) {
    %c0_i32 = arith.constant 0 : i32
    %c0_i32_0 = arith.constant 0 : i32
    return %arg0, %c0_i32 : i32, i32
  }
  func.func @transform_1(%arg0: i32) -> (i32, i32) {
    %c0_i32 = arith.constant 0 : i32
    %c0_i32_0 = arith.constant 0 : i32
    %c0_i32_1 = arith.constant 0 : i32
    return %c0_i32, %c0_i32_0 : i32, i32
  }
  func.func @transform_2(%arg0: i32) -> (i32, i32) {
    %c0_i32 = arith.constant 0 : i32
    %c0_i32_0 = arith.constant 0 : i32
    %c0_i32_1 = arith.constant 0 : i32
    return %c0_i32, %c0_i32_0 : i32, i32
  }
  func.func @transform_3(%arg0: i32) -> (i32, i32) {
    %c0_i32 = arith.constant 0 : i32
    %c0_i32_0 = arith.constant 0 : i32
    %c0_i32_1 = arith.constant 0 : i32
    return %c0_i32, %c0_i32_0 : i32, i32
  }
  func.func @transform_4(%arg0: i32) -> (i32, i32) {
    %c0_i32 = arith.constant 0 : i32
    %c0_i32_0 = arith.constant 0 : i32
    %c0_i32_1 = arith.constant 0 : i32
    return %c0_i32, %c0_i32_0 : i32, i32
  }
  func.func @transform_5(%arg0: i32) -> (i32, i32) {
    %c0_i32 = arith.constant 0 : i32
    %c0_i32_0 = arith.constant 0 : i32
    return %arg0, %c0_i32 : i32, i32
  }
}

</mosaic_0001>

<llo_original>
// kernel: _ffn_impl.1
$region0: #{_ffn_impl.1}
  #allocation0 [shape = 'u32[]', space=smem, size = 0x4, offset = 0x4, fixed_abs, tag = 'smem constant byte address 0x4 - core index']
  #allocation1 [shape = 'u32[144,128]{1,0:T(1,128)}', space=vmem, size = 0x12000, scoped, tag = 'internal scratch']
  %s0 = inlined_call_operand.vmem [shape: f32[16,128], index: 0, kind: input, shape index: {}]
  %s1 = inlined_call_operand.vmem [shape: f32[128,128], index: 1, kind: input, shape index: {}]
  %s2 = inlined_call_operand.vmem [shape: f32[1,128], index: 2, kind: input, shape index: {}]
  %s3 = inlined_call_operand.vmem [shape: f32[128,128], index: 3, kind: input, shape index: {}]
  %s4 = inlined_call_operand.vmem [shape: f32[1,128], index: 4, kind: input, shape index: {}]
  %s5 = inlined_call_operand.vmem [shape: f32[16,128], index: 5, kind: output, shape index: {}]
  %s6 = sld [smem:[#allocation0]]
  $region30: #{_ffn_impl.1} parent=0
    _
  %s8 = ssub.s32 1, %s6
  %s9 = scalar_select 0, %s8, %s6
  // Predicated region
  $region2: #{_ffn_impl.1} parent=0 // pred_check
    _
  $region3: #{_ffn_impl.1} parent=0 // pred_check_branch
    %11 = sbr.rel (0) target = $region5
  $region4: #{_ffn_impl.1} parent=0 // pred_region
    _
  $region5: #{_ffn_impl.1} parent=0 // pred_fallthru
    _
  // Predicated region
  $region6: #{_ffn_impl.1} parent=0 // pred_check
    _
  $region7: #{_ffn_impl.1} parent=0 // pred_check_branch
    %13 = sbr.rel (0) target = $region9
  $region8: #{_ffn_impl.1} parent=0 // pred_region
    _
  $region9: #{_ffn_impl.1} parent=0 // pred_fallthru
    _
  // Predicated region
  $region10: #{_ffn_impl.1} parent=0 // pred_check
    _
  $region11: #{_ffn_impl.1} parent=0 // pred_check_branch
    %15 = sbr.rel (0) target = $region13
  $region12: #{_ffn_impl.1} parent=0 // pred_region
    _
  $region13: #{_ffn_impl.1} parent=0 // pred_fallthru
    _
  // Predicated region
  $region14: #{_ffn_impl.1} parent=0 // pred_check
    _
  $region15: #{_ffn_impl.1} parent=0 // pred_check_branch
    %17 = sbr.rel (0) target = $region17
  $region16: #{_ffn_impl.1} parent=0 // pred_region
    _
  $region17: #{_ffn_impl.1} parent=0 // pred_fallthru
    _
  // Predicated region
  $region18: #{_ffn_impl.1} parent=0 // pred_check
    _
  $region19: #{_ffn_impl.1} parent=0 // pred_check_branch
    %19 = sbr.rel (0) target = $region21
  $region20: #{_ffn_impl.1} parent=0 // pred_region
    _
  $region21: #{_ffn_impl.1} parent=0 // pred_fallthru
    _
  %v20 = vld [vmem:[%s0] sm:$0xff]
  %v21 = vld [vmem:[%s0 + $0x8] sm:$0xff]
  %v22 = vld [vmem:[%s1] sm:$0xff]
  %v23 = vld [vmem:[%s1 + $0x8] sm:$0xff]
  %v24 = vld [vmem:[%s1 + $0x10] sm:$0xff]
  %v25 = vld [vmem:[%s1 + $0x18] sm:$0xff]
  %v26 = vld [vmem:[%s1 + $0x20] sm:$0xff]
  %v27 = vld [vmem:[%s1 + $0x28] sm:$0xff]
  %v28 = vld [vmem:[%s1 + $0x30] sm:$0xff]
  %v29 = vld [vmem:[%s1 + $0x38] sm:$0xff]
  %v30 = vld [vmem:[%s1 + $0x40] sm:$0xff]
  %v31 = vld [vmem:[%s1 + $0x48] sm:$0xff]
  %v32 = vld [vmem:[%s1 + $0x50] sm:$0xff]
  %v33 = vld [vmem:[%s1 + $0x58] sm:$0xff]
  %v34 = vld [vmem:[%s1 + $0x60] sm:$0xff]
  %v35 = vld [vmem:[%s1 + $0x68] sm:$0xff]
  %v36 = vld [vmem:[%s1 + $0x70] sm:$0xff]
  %v37 = vld [vmem:[%s1 + $0x78] sm:$0xff]
  %v38 = vld [vmem:[%s2] sm:$0x1]
  %v40 = vlaneseq
  %v41 = vshrl.u32 %v40, 7
  %v42 = vsub.s32 0, %v41
  %v43 = vrot.slane %v38, %v42
  %45 = vmatprep.subr.mxu0 0.0
  %46 = vmatpush1.msra.mxu0 %v37
  %47 = vmatprep.subr.mxu0 0.0
  %48 = vmatpush1.msra.mxu0 %v36
  %49 = vmatprep.subr.mxu0 0.0
  %50 = vmatpush1.msra.mxu0 %v35
  %51 = vmatprep.subr.mxu0 0.0
  %52 = vmatpush1.msra.mxu0 %v34
  %53 = vmatprep.subr.mxu0 0.0
  %54 = vmatpush1.msra.mxu0 %v33
  %55 = vmatprep.subr.mxu0 0.0
  %56 = vmatpush1.msra.mxu0 %v32
  %57 = vmatprep.subr.mxu0 0.0
  %58 = vmatpush1.msra.mxu0 %v31
  %59 = vmatprep.subr.mxu0 0.0
  %60 = vmatpush1.msra.mxu0 %v30
  %61 = vmatprep.subr.mxu0 0.0
  %62 = vmatpush1.msra.mxu0 %v29
  %63 = vmatprep.subr.mxu0 0.0
  %64 = vmatpush1.msra.mxu0 %v28
  %65 = vmatprep.subr.mxu0 0.0
  %66 = vmatpush1.msra.mxu0 %v27
  %67 = vmatprep.subr.mxu0 0.0
  %68 = vmatpush1.msra.mxu0 %v26
  %69 = vmatprep.subr.mxu0 0.0
  %70 = vmatpush1.msra.mxu0 %v25
  %71 = vmatprep.subr.mxu0 0.0
  %72 = vmatpush1.msra.mxu0 %v24
  %73 = vmatprep.subr.mxu0 0.0
  %74 = vmatpush1.msra.mxu0 %v23
  %75 = vmatprep.subr.mxu0 0.0
  %76 = vmatpush1.msra.mxu0 %v22
  %77 = vmatprep.subr.mxu0 0.0
  %78 = vmatpush2.msra.mxu0 0.0
  %79 = vmatprep.subr.mxu0 0.0
  %80 = vmatpush2.msra.mxu0 0.0
  %81 = vmatprep.subr.mxu0 0.0
  %82 = vmatpush2.msra.mxu0 0.0
  %83 = vmatprep.subr.mxu0 0.0
  %84 = vmatpush2.msra.mxu0 0.0
  %85 = vmatprep.subr.mxu0 0.0
  %86 = vmatpush2.msra.mxu0 0.0
  %87 = vmatprep.subr.mxu0 0.0
  %88 = vmatpush2.msra.mxu0 0.0
  %89 = vmatprep.subr.mxu0 0.0
  %90 = vmatpush2.msra.mxu0 0.0
  %91 = vmatprep.subr.mxu0 0.0
  %92 = vmatpush2.msra.mxu0 0.0
  %93 = vmatprep.subr.mxu0 0.0
  %94 = vmatpush2.msra.mxu0 0.0
  %95 = vmatprep.subr.mxu0 0.0
  %96 = vmatpush2.msra.mxu0 0.0
  %97 = vmatprep.subr.mxu0 0.0
  %98 = vmatpush2.msra.mxu0 0.0
  %99 = vmatprep.subr.mxu0 0.0
  %100 = vmatpush2.msra.mxu0 0.0
  %101 = vmatprep.subr.mxu0 0.0
  %102 = vmatpush2.msra.mxu0 0.0
  %103 = vmatprep.subr.mxu0 0.0
  %104 = vmatpush2.msra.mxu0 0.0
  %105 = vmatprep.subr.mxu0 0.0
  %106 = vmatpush2.msra.mxu0 0.0
  %107 = vmatprep.subr.mxu0 0.0
  %108 = vmatpush2.msra.mxu0 0.0
  %109 = vmatprep.mubr.f32.mxu0 0.0
  %110 = vmatmul.mubr.f32.gmra.mxu0 %v20
  %v111 = vpop.f32.mrf.mxu0
  %v112 = vadd.f32 %v43, %v111
  %v113 = vpop.f32.mrf.mxu0
  %114 = vmatprep.mubr.f32.mxu0 0.0
  %115 = vmatmul.mubr.f32.gmra.mxu0 %v21
  %v116 = vpop.f32.mrf.mxu0
  %v117 = vadd.f32 %v43, %v116
  %v118 = vpop.f32.mrf.mxu0
  %119 = vdwg.mxu0
  %v120 = vmax.f32 %v112, 0.0
  %v121 = vmax.f32 %v117, 0.0
  %v122 = vld [vmem:[%s3] sm:$0xff]
  %v123 = vld [vmem:[%s3 + $0x8] sm:$0xff]
  %v124 = vld [vmem:[%s3 + $0x10] sm:$0xff]
  %v125 = vld [vmem:[%s3 + $0x18] sm:$0xff]
  %v126 = vld [vmem:[%s3 + $0x20] sm:$0xff]
  %v127 = vld [vmem:[%s3 + $0x28] sm:$0xff]
  %v128 = vld [vmem:[%s3 + $0x30] sm:$0xff]
  %v129 = vld [vmem:[%s3 + $0x38] sm:$0xff]
  %v130 = vld [vmem:[%s3 + $0x40] sm:$0xff]
  %v131 = vld [vmem:[%s3 + $0x48] sm:$0xff]
  %v132 = vld [vmem:[%s3 + $0x50] sm:$0xff]
  %v133 = vld [vmem:[%s3 + $0x58] sm:$0xff]
  %v134 = vld [vmem:[%s3 + $0x60] sm:$0xff]
  %v135 = vld [vmem:[%s3 + $0x68] sm:$0xff]
  %v136 = vld [vmem:[%s3 + $0x70] sm:$0xff]
  %v137 = vld [vmem:[%s3 + $0x78] sm:$0xff]
  %v138 = vld [vmem:[%s4] sm:$0x1]
  %v140 = vlaneseq
  %v141 = vshrl.u32 %v140, 7
  %v142 = vsub.s32 0, %v141
  %v143 = vrot.slane %v138, %v142
  %145 = vmatprep.subr.mxu0 0.0
  %146 = vmatpush1.msra.mxu0 %v137
  %147 = vmatprep.subr.mxu0 0.0
  %148 = vmatpush1.msra.mxu0 %v136
  %149 = vmatprep.subr.mxu0 0.0
  %150 = vmatpush1.msra.mxu0 %v135
  %151 = vmatprep.subr.mxu0 0.0
  %152 = vmatpush1.msra.mxu0 %v134
  %153 = vmatprep.subr.mxu0 0.0
  %154 = vmatpush1.msra.mxu0 %v133
  %155 = vmatprep.subr.mxu0 0.0
  %156 = vmatpush1.msra.mxu0 %v132
  %157 = vmatprep.subr.mxu0 0.0
  %158 = vmatpush1.msra.mxu0 %v131
  %159 = vmatprep.subr.mxu0 0.0
  %160 = vmatpush1.msra.mxu0 %v130
  %161 = vmatprep.subr.mxu0 0.0
  %162 = vmatpush1.msra.mxu0 %v129
  %163 = vmatprep.subr.mxu0 0.0
  %164 = vmatpush1.msra.mxu0 %v128
  %165 = vmatprep.subr.mxu0 0.0
  %166 = vmatpush1.msra.mxu0 %v127
  %167 = vmatprep.subr.mxu0 0.0
  %168 = vmatpush1.msra.mxu0 %v126
  %169 = vmatprep.subr.mxu0 0.0
  %170 = vmatpush1.msra.mxu0 %v125
  %171 = vmatprep.subr.mxu0 0.0
  %172 = vmatpush1.msra.mxu0 %v124
  %173 = vmatprep.subr.mxu0 0.0
  %174 = vmatpush1.msra.mxu0 %v123
  %175 = vmatprep.subr.mxu0 0.0
  %176 = vmatpush1.msra.mxu0 %v122
  %177 = vmatprep.subr.mxu0 0.0
  %178 = vmatpush2.msra.mxu0 0.0
  %179 = vmatprep.subr.mxu0 0.0
  %180 = vmatpush2.msra.mxu0 0.0
  %181 = vmatprep.subr.mxu0 0.0
  %182 = vmatpush2.msra.mxu0 0.0
  %183 = vmatprep.subr.mxu0 0.0
  %184 = vmatpush2.msra.mxu0 0.0
  %185 = vmatprep.subr.mxu0 0.0
  %186 = vmatpush2.msra.mxu0 0.0
  %187 = vmatprep.subr.mxu0 0.0
  %188 = vmatpush2.msra.mxu0 0.0
  %189 = vmatprep.subr.mxu0 0.0
  %190 = vmatpush2.msra.mxu0 0.0
  %191 = vmatprep.subr.mxu0 0.0
  %192 = vmatpush2.msra.mxu0 0.0
  %193 = vmatprep.subr.mxu0 0.0
  %194 = vmatpush2.msra.mxu0 0.0
  %195 = vmatprep.subr.mxu0 0.0
  %196 = vmatpush2.msra.mxu0 0.0
  %197 = vmatprep.subr.mxu0 0.0
  %198 = vmatpush2.msra.mxu0 0.0
  %199 = vmatprep.subr.mxu0 0.0
  %200 = vmatpush2.msra.mxu0 0.0
  %201 = vmatprep.subr.mxu0 0.0
  %202 = vmatpush2.msra.mxu0 0.0
  %203 = vmatprep.subr.mxu0 0.0
  %204 = vmatpush2.msra.mxu0 0.0
  %205 = vmatprep.subr.mxu0 0.0
  %206 = vmatpush2.msra.mxu0 0.0
  %207 = vmatprep.subr.mxu0 0.0
  %208 = vmatpush2.msra.mxu0 0.0
  %209 = vmatprep.mubr.f32.mxu0 0.0
  %210 = vmatmul.mubr.f32.gmra.mxu0 %v120
  %v211 = vpop.f32.mrf.mxu0
  %v212 = vadd.f32 %v143, %v211
  %v213 = vpop.f32.mrf.mxu0
  %214 = vmatprep.mubr.f32.mxu0 0.0
  %215 = vmatmul.mubr.f32.gmra.mxu0 %v121
  %v216 = vpop.f32.mrf.mxu0
  %v217 = vadd.f32 %v143, %v216
  %v218 = vpop.f32.mrf.mxu0
  %219 = vdwg.mxu0
  %220 = vst [vmem:[%s5] sm:$0xff] %v212
  %221 = vst [vmem:[%s5 + $0x8] sm:$0xff] %v217
  // Predicated region
  $region22: #{_ffn_impl.1} parent=0 // pred_check
    _
  $region23: #{_ffn_impl.1} parent=0 // pred_check_branch
    %223 = sbr.rel (0) target = $region25
  $region24: #{_ffn_impl.1} parent=0 // pred_region
    _
  $region25: #{_ffn_impl.1} parent=0 // pred_fallthru
    _
  // Predicated region
  $region26: #{_ffn_impl.1} parent=0 // pred_check
    _
  $region27: #{_ffn_impl.1} parent=0 // pred_check_branch
    %225 = sbr.rel (0) target = $region29
  $region28: #{_ffn_impl.1} parent=0 // pred_region
    _
  $region29: #{_ffn_impl.1} parent=0 // pred_fallthru
    _

</llo_original>
